<compile_context>
chip_gen: v5e
topology: v5e:2x2
jax: 0.10.0
libtpu: 0.0.40
codegen_flags: <defaults>
</compile_context>

<pallas_src>
import math

import jax
import jax.numpy as jnp
from jax.experimental import pallas as pl
from jax.experimental.pallas import tpu as pltpu


# ---------------------------------------------------------------------------
# Fused forward kernel
# ---------------------------------------------------------------------------
def _fused_bgcn_kernel(adj_ref, inv_r_ref, inv_c_ref, uni_ref, sub_ref,
                       ws_ref, wu_ref, sub_out_ref, uni_out_ref):
    adj = adj_ref[...]            # (Up, Sp)  bf16  (unnormalized)
    adjT = adj.T                  # (Sp, Up)  bf16  -- one bf16 XLU transpose, reused 3x
    inv_r = inv_r_ref[...]        # (Up, 1)   f32   1/rowsum(adj)   (0 for zero rows)
    inv_c = inv_c_ref[...]        # (Sp, 1)   f32   1/colsum(adj)   (0 for zero cols)
    uni0 = uni_ref[...]           # (Up, Fu)  bf16
    sub0 = sub_ref[...]           # (Sp, Fs)  bf16
    w_s = ws_ref[...]             # (Fu, Fs)  bf16
    w_u = wu_ref[...]             # (Fs, Fu)  bf16

    # One GraphConvLayer, reordered as adj @ (X @ W), with the row-normalization of
    # the adjacency folded onto the small (nodes x 128) f32 output:
    #   PyTorch: (diag(1/colsum(adj)) @ adj.T) @ X @ Ws  ==  inv_c * (adj.T @ (X @ Ws))
    #   PyTorch: (diag(1/rowsum(adj)) @ adj  ) @ Y @ Wu  ==  inv_r * (adj   @ (Y @ Wu))
    def s_layer(x_bf16):          # (Up, Fu) bf16 -> (Sp, Fs) f32
        xw = jnp.dot(x_bf16, w_s, preferred_element_type=jnp.float32)
        out = jnp.dot(adjT, xw.astype(jnp.bfloat16),
                      preferred_element_type=jnp.float32)
        return inv_c * out

    def u_layer(y_bf16):          # (Sp, Fs) bf16 -> (Up, Fu) f32
        yw = jnp.dot(y_bf16, w_u, preferred_element_type=jnp.float32)
        out = jnp.dot(adj, yw.astype(jnp.bfloat16),
                      preferred_element_type=jnp.float32)
        return inv_r * out

    # --- the six-layer chain from the PyTorch forward (only s1/u1 are used) ---
    sub1 = s_layer(uni0)                           # sub_feat_ = s1(adjT, uni_feat)
    uni1 = u_layer(sub0)                           # uni_feat_ = u1(adj,  sub_feat)
    sub2 = s_layer(uni1.astype(jnp.bfloat16))      # sub_feat  = s1(adjT, uni_feat_)
    uni2 = u_layer(sub1.astype(jnp.bfloat16))      # uni_feat  = u1(adj,  sub_feat_)
    sub3 = s_layer(uni2.astype(jnp.bfloat16))      # sub_feat_ = s1(adjT, uni_feat)   -> output
    uni3 = u_layer(sub2.astype(jnp.bfloat16))      # uni_feat_ = u1(adj,  sub_feat)   -> output

    sub_out_ref[...] = sub3.astype(sub_out_ref.dtype)
    uni_out_ref[...] = uni3.astype(uni_out_ref.dtype)


# ---------------------------------------------------------------------------
# Wrapper: pad to TPU-friendly shapes, call the fused kernel, slice back.
# ---------------------------------------------------------------------------
def _round_up(x, m):
    return ((x + m - 1) // m) * m


def _pad2(x, rows, cols):
    return jnp.pad(x, ((0, rows - x.shape[0]), (0, cols - x.shape[1])))


def _vmem_budget_bytes():
    # ~85% of physical VMEM: ~54 MiB on v7x (64 MiB), ~109 MiB on v5e/v6e (128 MiB).
    cap = 128 * 1024 * 1024
    try:
        info = pltpu.get_tpu_info()
        cap = int(getattr(info, "vmem_capacity_bytes", cap)) or cap
    except Exception:
        pass
    return int(cap * 0.85)


def bipartite_gcn_forward(params, adj, uni_feat, sub_feat):
    # (datetime timing prints in the PyTorch forward are logging only — dropped)
    n_uni, n_sub = adj.shape
    n_uf = uni_feat.shape[1]
    n_sf = sub_feat.shape[1]

    # Node dims are lane/K dims of the adjacency matmuls -> 128-aligned.
    # Feature dims are lane dims of features/outputs       -> 128-aligned.
    Up, Sp = _round_up(n_uni, 128), _round_up(n_sub, 128)
    Fu, Fs = _round_up(n_uf, 128), _round_up(n_sf, 128)

    adj32 = adj.astype(jnp.float32)
    # Exact f32 normalization scales, computed once in the wrapper.
    rs = jnp.sum(adj32, axis=1, keepdims=True)          # (n_uni, 1)  rowsum(adj)
    cs = jnp.sum(adj32, axis=0)[:, None]                # (n_sub, 1)  colsum(adj)
    # Guarded: zero-sum rows/cols only occur for padded (or genuinely isolated) nodes.
    # (PyTorch would produce inf/NaN for genuinely isolated nodes.)
    inv_r = jnp.where(rs > 0.0, 1.0 / rs, 0.0)
    inv_c = jnp.where(cs > 0.0, 1.0 / cs, 0.0)

    # Cast first, pad the bf16 copy (half the pad traffic of padding f32).
    adj_p = _pad2(adj32.astype(jnp.bfloat16), Up, Sp)
    inv_r_p = _pad2(inv_r, Up, 1)
    inv_c_p = _pad2(inv_c, Sp, 1)
    uni_p = _pad2(uni_feat.astype(jnp.bfloat16), Up, Fu)
    sub_p = _pad2(sub_feat.astype(jnp.bfloat16), Sp, Fs)
    ws_p = _pad2(params["s1"].astype(jnp.bfloat16), Fu, Fs)
    wu_p = _pad2(params["u1"].astype(jnp.bfloat16), Fs, Fu)

    # Advisory cost estimate.
    flops = 3 * (2 * Up * Fu * Fs + 2 * Sp * Up * Fs) \
          + 3 * (2 * Sp * Fs * Fu + 2 * Up * Sp * Fu)
    bytes_accessed = 2 * (Up * Sp + Up * Fu + Sp * Fs + 2 * Fu * Fs) \
                   + 4 * (Up + Sp + Up * Fu + Sp * Fs)

    sub_out_p, uni_out_p = pl.pallas_call(
        _fused_bgcn_kernel,
        out_shape=(
            jax.ShapeDtypeStruct((Sp, Fs), jnp.float32),
            jax.ShapeDtypeStruct((Up, Fu), jnp.float32),
        ),
        in_specs=[
            pl.BlockSpec((Up, Sp), lambda: (0, 0)),
            pl.BlockSpec((Up, 1), lambda: (0, 0)),
            pl.BlockSpec((Sp, 1), lambda: (0, 0)),
            pl.BlockSpec((Up, Fu), lambda: (0, 0)),
            pl.BlockSpec((Sp, Fs), lambda: (0, 0)),
            pl.BlockSpec((Fu, Fs), lambda: (0, 0)),
            pl.BlockSpec((Fs, Fu), lambda: (0, 0)),
        ],
        out_specs=(
            pl.BlockSpec((Sp, Fs), lambda: (0, 0)),
            pl.BlockSpec((Up, Fu), lambda: (0, 0)),
        ),
        compiler_params=pltpu.CompilerParams(
            vmem_limit_bytes=_vmem_budget_bytes()),
        cost_estimate=pl.CostEstimate(
            flops=int(flops),
            transcendentals=0,
            bytes_accessed=int(bytes_accessed),
        ),
    )(adj_p, inv_r_p, inv_c_p, uni_p, sub_p, ws_p, wu_p)

    return sub_out_p[:n_sub, :n_sf], uni_out_p[:n_uni, :n_uf]


# ---------------------------------------------------------------------------
# Parameter init (deterministic xavier_normal_, gain=1)
# ---------------------------------------------------------------------------
def init_params(key, n_uni_feat, n_sub_feat):
    def xavier_normal(k, in_f, out_f):
        std = math.sqrt(2.0 / (in_f + out_f))
        return std * jax.random.normal(k, (in_f, out_f), dtype=jnp.float32)

    keys = jax.random.split(key, 6)
    return {
        "s1": xavier_normal(keys[0], n_uni_feat, n_sub_feat),
        "s2": xavier_normal(keys[1], n_uni_feat, n_sub_feat),
        "s3": xavier_normal(keys[2], n_uni_feat, n_sub_feat),
        "u1": xavier_normal(keys[3], n_sub_feat, n_uni_feat),
        "u2": xavier_normal(keys[4], n_sub_feat, n_uni_feat),
        "u3": xavier_normal(keys[5], n_sub_feat, n_uni_feat),
    }


# Pure-JAX fp32 reference (spec math and ordering), for a sanity check.
def _reference_forward(params, adj, uni_feat, sub_feat):
    def norm(a):
        return a / jnp.sum(a, axis=1, keepdims=True)

    def gcn(a, f, w):
        return (a @ f) @ w

    adjT = norm(adj.T)
    adjn = norm(adj)
    w_s1, w_u1 = params["s1"], params["u1"]
    sub_feat_ = gcn(adjT, uni_feat, w_s1)
    uni_feat_ = gcn(adjn, sub_feat, w_u1)
    sub_feat = gcn(adjT, uni_feat_, w_s1)
    uni_feat = gcn(adjn, sub_feat_, w_u1)
    sub_feat_ = gcn(adjT, uni_feat, w_s1)
    uni_feat_ = gcn(adjn, sub_feat, w_u1)
    return sub_feat_, uni_feat_


if __name__ == "__main__":
    # Small synthetic problem sizes.
    n_uni_nodes, n_sub_nodes = 16, 32
    n_uni_feat, n_sub_feat = 8, 16

    key = jax.random.PRNGKey(0)
    k_adj, k_uni, k_sub, k_par = jax.random.split(key, 4)

    # Positive adjacency so both adj and adj.T have nonzero row sums.
    adj = jax.random.uniform(
        k_adj, (n_uni_nodes, n_sub_nodes), dtype=jnp.float32, minval=0.1, maxval=1.0
    )
    uni_feat = jax.random.normal(k_uni, (n_uni_nodes, n_uni_feat), dtype=jnp.float32)
    sub_feat = jax.random.normal(k_sub, (n_sub_nodes, n_sub_feat), dtype=jnp.float32)

    params = init_params(k_par, n_uni_feat, n_sub_feat)

    fwd = jax.jit(bipartite_gcn_forward)
    sub_out, uni_out = fwd(params, adj, uni_feat, sub_feat)
    jax.block_until_ready((sub_out, uni_out))

    # Sanity-check against the pure-JAX fp32 reference (kernel uses bf16 MXU inputs
    # with fp32 accumulation, hence the tolerance).
    sub_ref, uni_ref = _reference_forward(params, adj, uni_feat, sub_feat)
    assert sub_out.shape == (n_sub_nodes, n_sub_feat)
    assert uni_out.shape == (n_uni_nodes, n_uni_feat)
    assert bool(jnp.allclose(sub_out, sub_ref, atol=2e-3, rtol=2e-2))
    assert bool(jnp.allclose(uni_out, uni_ref, atol=2e-3, rtol=2e-2))

    print("KERNEL_OK")
</pallas_src>

<mosaic_0001>
module attributes {stable_mosaic.version = 11 : i64} {
  func.func @_fused_bgcn_kernel(%arg0: memref<128x128xbf16, #tpu.memory_space<vmem>>, %arg1: memref<128x1xf32, #tpu.memory_space<vmem>>, %arg2: memref<128x1xf32, #tpu.memory_space<vmem>>, %arg3: memref<128x128xbf16, #tpu.memory_space<vmem>>, %arg4: memref<128x128xbf16, #tpu.memory_space<vmem>>, %arg5: memref<128x128xbf16, #tpu.memory_space<vmem>>, %arg6: memref<128x128xbf16, #tpu.memory_space<vmem>>, %arg7: memref<128x128xf32, #tpu.memory_space<vmem>>, %arg8: memref<128x128xf32, #tpu.memory_space<vmem>>) attributes {dimension_semantics = [], scalar_prefetch = 0 : i64, scratch_operands = 0 : i64, tpu.core_type = #tpu.core_type<tc>} {
    %c0 = arith.constant 0 : index
    %c0_0 = arith.constant 0 : index
    %0 = vector.load %arg0[%c0, %c0_0] : memref<128x128xbf16, #tpu.memory_space<vmem>>, vector<128x128xbf16>
    %1 = tpu.transpose %0, [1, 0] : vector<128x128xbf16> -> vector<128x128xbf16>
    %c0_1 = arith.constant 0 : index
    %c0_2 = arith.constant 0 : index
    %2 = vector.load %arg1[%c0_1, %c0_2] : memref<128x1xf32, #tpu.memory_space<vmem>>, vector<128x1xf32>
    %c0_3 = arith.constant 0 : index
    %c0_4 = arith.constant 0 : index
    %3 = vector.load %arg2[%c0_3, %c0_4] : memref<128x1xf32, #tpu.memory_space<vmem>>, vector<128x1xf32>
    %c0_5 = arith.constant 0 : index
    %c0_6 = arith.constant 0 : index
    %4 = vector.load %arg3[%c0_5, %c0_6] : memref<128x128xbf16, #tpu.memory_space<vmem>>, vector<128x128xbf16>
    %c0_7 = arith.constant 0 : index
    %c0_8 = arith.constant 0 : index
    %5 = vector.load %arg4[%c0_7, %c0_8] : memref<128x128xbf16, #tpu.memory_space<vmem>>, vector<128x128xbf16>
    %c0_9 = arith.constant 0 : index
    %c0_10 = arith.constant 0 : index
    %6 = vector.load %arg5[%c0_9, %c0_10] : memref<128x128xbf16, #tpu.memory_space<vmem>>, vector<128x128xbf16>
    %c0_11 = arith.constant 0 : index
    %c0_12 = arith.constant 0 : index
    %7 = vector.load %arg6[%c0_11, %c0_12] : memref<128x128xbf16, #tpu.memory_space<vmem>>, vector<128x128xbf16>
    %cst = arith.constant dense<0.000000e+00> : vector<128x128xf32>
    %8 = tpu.matmul %4, %6, %cst {dimension_numbers = #tpu.dot_dimension_numbers<[1], [0], [0], [1], [0, 0, 1, 1], [], []>} : vector<128x128xbf16>, vector<128x128xbf16>, vector<128x128xf32> -> vector<128x128xf32>
    %9 = arith.truncf %8 : vector<128x128xf32> to vector<128x128xbf16>
    %cst_13 = arith.constant dense<0.000000e+00> : vector<128x128xf32>
    %10 = tpu.matmul %1, %9, %cst_13 {dimension_numbers = #tpu.dot_dimension_numbers<[1], [0], [0], [1], [0, 0, 1, 1], [], []>} : vector<128x128xbf16>, vector<128x128xbf16>, vector<128x128xf32> -> vector<128x128xf32>
    %11 = vector.broadcast %3 : vector<128x1xf32> to vector<128x128xf32>
    %12 = arith.mulf %11, %10 : vector<128x128xf32>
    %cst_14 = arith.constant dense<0.000000e+00> : vector<128x128xf32>
    %13 = tpu.matmul %5, %7, %cst_14 {dimension_numbers = #tpu.dot_dimension_numbers<[1], [0], [0], [1], [0, 0, 1, 1], [], []>} : vector<128x128xbf16>, vector<128x128xbf16>, vector<128x128xf32> -> vector<128x128xf32>
    %14 = arith.truncf %13 : vector<128x128xf32> to vector<128x128xbf16>
    %cst_15 = arith.constant dense<0.000000e+00> : vector<128x128xf32>
    %15 = tpu.matmul %0, %14, %cst_15 {dimension_numbers = #tpu.dot_dimension_numbers<[1], [0], [0], [1], [0, 0, 1, 1], [], []>} : vector<128x128xbf16>, vector<128x128xbf16>, vector<128x128xf32> -> vector<128x128xf32>
    %16 = vector.broadcast %2 : vector<128x1xf32> to vector<128x128xf32>
    %17 = arith.mulf %16, %15 : vector<128x128xf32>
    %18 = arith.truncf %17 : vector<128x128xf32> to vector<128x128xbf16>
    %cst_16 = arith.constant dense<0.000000e+00> : vector<128x128xf32>
    %19 = tpu.matmul %18, %6, %cst_16 {dimension_numbers = #tpu.dot_dimension_numbers<[1], [0], [0], [1], [0, 0, 1, 1], [], []>} : vector<128x128xbf16>, vector<128x128xbf16>, vector<128x128xf32> -> vector<128x128xf32>
    %20 = arith.truncf %19 : vector<128x128xf32> to vector<128x128xbf16>
    %cst_17 = arith.constant dense<0.000000e+00> : vector<128x128xf32>
    %21 = tpu.matmul %1, %20, %cst_17 {dimension_numbers = #tpu.dot_dimension_numbers<[1], [0], [0], [1], [0, 0, 1, 1], [], []>} : vector<128x128xbf16>, vector<128x128xbf16>, vector<128x128xf32> -> vector<128x128xf32>
    %22 = vector.broadcast %3 : vector<128x1xf32> to vector<128x128xf32>
    %23 = arith.mulf %22, %21 : vector<128x128xf32>
    %24 = arith.truncf %12 : vector<128x128xf32> to vector<128x128xbf16>
    %cst_18 = arith.constant dense<0.000000e+00> : vector<128x128xf32>
    %25 = tpu.matmul %24, %7, %cst_18 {dimension_numbers = #tpu.dot_dimension_numbers<[1], [0], [0], [1], [0, 0, 1, 1], [], []>} : vector<128x128xbf16>, vector<128x128xbf16>, vector<128x128xf32> -> vector<128x128xf32>
    %26 = arith.truncf %25 : vector<128x128xf32> to vector<128x128xbf16>
    %cst_19 = arith.constant dense<0.000000e+00> : vector<128x128xf32>
    %27 = tpu.matmul %0, %26, %cst_19 {dimension_numbers = #tpu.dot_dimension_numbers<[1], [0], [0], [1], [0, 0, 1, 1], [], []>} : vector<128x128xbf16>, vector<128x128xbf16>, vector<128x128xf32> -> vector<128x128xf32>
    %28 = vector.broadcast %2 : vector<128x1xf32> to vector<128x128xf32>
    %29 = arith.mulf %28, %27 : vector<128x128xf32>
    %30 = arith.truncf %29 : vector<128x128xf32> to vector<128x128xbf16>
    %cst_20 = arith.constant dense<0.000000e+00> : vector<128x128xf32>
    %31 = tpu.matmul %30, %6, %cst_20 {dimension_numbers = #tpu.dot_dimension_numbers<[1], [0], [0], [1], [0, 0, 1, 1], [], []>} : vector<128x128xbf16>, vector<128x128xbf16>, vector<128x128xf32> -> vector<128x128xf32>
    %32 = arith.truncf %31 : vector<128x128xf32> to vector<128x128xbf16>
    %cst_21 = arith.constant dense<0.000000e+00> : vector<128x128xf32>
    %33 = tpu.matmul %1, %32, %cst_21 {dimension_numbers = #tpu.dot_dimension_numbers<[1], [0], [0], [1], [0, 0, 1, 1], [], []>} : vector<128x128xbf16>, vector<128x128xbf16>, vector<128x128xf32> -> vector<128x128xf32>
    %34 = vector.broadcast %3 : vector<128x1xf32> to vector<128x128xf32>
    %35 = arith.mulf %34, %33 : vector<128x128xf32>
    %36 = arith.truncf %23 : vector<128x128xf32> to vector<128x128xbf16>
    %cst_22 = arith.constant dense<0.000000e+00> : vector<128x128xf32>
    %37 = tpu.matmul %36, %7, %cst_22 {dimension_numbers = #tpu.dot_dimension_numbers<[1], [0], [0], [1], [0, 0, 1, 1], [], []>} : vector<128x128xbf16>, vector<128x128xbf16>, vector<128x128xf32> -> vector<128x128xf32>
    %38 = arith.truncf %37 : vector<128x128xf32> to vector<128x128xbf16>
    %cst_23 = arith.constant dense<0.000000e+00> : vector<128x128xf32>
    %39 = tpu.matmul %0, %38, %cst_23 {dimension_numbers = #tpu.dot_dimension_numbers<[1], [0], [0], [1], [0, 0, 1, 1], [], []>} : vector<128x128xbf16>, vector<128x128xbf16>, vector<128x128xf32> -> vector<128x128xf32>
    %40 = vector.broadcast %2 : vector<128x1xf32> to vector<128x128xf32>
    %41 = arith.mulf %40, %39 : vector<128x128xf32>
    %c0_24 = arith.constant 0 : index
    %c0_25 = arith.constant 0 : index
    %42 = vector.load %arg7[%c0_24, %c0_25] : memref<128x128xf32, #tpu.memory_space<vmem>>, vector<128x128xf32>
    tpu.vector_store %arg7[%c0_24, %c0_25], %35 {strides = array<i32>} : memref<128x128xf32, #tpu.memory_space<vmem>>, vector<128x128xf32>,
    %c0_26 = arith.constant 0 : index
    %c0_27 = arith.constant 0 : index
    %43 = vector.load %arg8[%c0_26, %c0_27] : memref<128x128xf32, #tpu.memory_space<vmem>>, vector<128x128xf32>
    tpu.vector_store %arg8[%c0_26, %c0_27], %41 {strides = array<i32>} : memref<128x128xf32, #tpu.memory_space<vmem>>, vector<128x128xf32>,
    return
  }
}

</mosaic_0001>

<llo_original>
// kernel: bipartite_gcn_forward.1
$region0: #{bipartite_gcn_forward.1}
  #allocation0 [shape = 'u32[]', space=smem, size = 0x4, offset = 0x4, fixed_abs, tag = 'smem constant byte address 0x4 - core index']
  #allocation1 [shape = 'u32[72,128]{1,0:T(1,128)}', space=vmem, size = 0x9000, scoped, tag = 'internal scratch']
  %s0 = inlined_call_operand.vmem [shape: bf16[128,128], index: 0, kind: input, shape index: {}]
  %s1 = inlined_call_operand.vmem [shape: f32[128,1], index: 1, kind: input, shape index: {}]
  %s2 = inlined_call_operand.vmem [shape: f32[128,1], index: 2, kind: input, shape index: {}]
  %s3 = inlined_call_operand.vmem [shape: bf16[128,128], index: 3, kind: input, shape index: {}]
  %s4 = inlined_call_operand.vmem [shape: bf16[128,128], index: 4, kind: input, shape index: {}]
  %s5 = inlined_call_operand.vmem [shape: bf16[128,128], index: 5, kind: input, shape index: {}]
  %s6 = inlined_call_operand.vmem [shape: bf16[128,128], index: 6, kind: input, shape index: {}]
  %s7 = inlined_call_operand.vmem [shape: f32[128,128], index: 7, kind: output, shape index: {0}]
  %s8 = inlined_call_operand.vmem [shape: f32[128,128], index: 8, kind: output, shape index: {1}]
  %9 = xla_tuple %s7, %s8
  %s10 = sld [smem:[#allocation0]]
  $region46: #{bipartite_gcn_forward.1} parent=0
    _
  %s12 = ssub.s32 1, %s10
  %s13 = scalar_select 0, %s12, %s10
  // Predicated region
  $region2: #{bipartite_gcn_forward.1} parent=0 // pred_check
    _
  $region3: #{bipartite_gcn_forward.1} parent=0 // pred_check_branch
    %15 = sbr.rel (0) target = $region5
  $region4: #{bipartite_gcn_forward.1} parent=0 // pred_region
    _
  $region5: #{bipartite_gcn_forward.1} parent=0 // pred_fallthru
    _
  // Predicated region
  $region6: #{bipartite_gcn_forward.1} parent=0 // pred_check
    _
  $region7: #{bipartite_gcn_forward.1} parent=0 // pred_check_branch
    %17 = sbr.rel (0) target = $region9
  $region8: #{bipartite_gcn_forward.1} parent=0 // pred_region
    _
  $region9: #{bipartite_gcn_forward.1} parent=0 // pred_fallthru
    _
  // Predicated region
  $region10: #{bipartite_gcn_forward.1} parent=0 // pred_check
    _
  $region11: #{bipartite_gcn_forward.1} parent=0 // pred_check_branch
    %19 = sbr.rel (0) target = $region13
  $region12: #{bipartite_gcn_forward.1} parent=0 // pred_region
    _
  $region13: #{bipartite_gcn_forward.1} parent=0 // pred_fallthru
    _
  // Predicated region
  $region14: #{bipartite_gcn_forward.1} parent=0 // pred_check
    _
  $region15: #{bipartite_gcn_forward.1} parent=0 // pred_check_branch
    %21 = sbr.rel (0) target = $region17
  $region16: #{bipartite_gcn_forward.1} parent=0 // pred_region
    _
  $region17: #{bipartite_gcn_forward.1} parent=0 // pred_fallthru
    _
  // Predicated region
  $region18: #{bipartite_gcn_forward.1} parent=0 // pred_check
    _
  $region19: #{bipartite_gcn_forward.1} parent=0 // pred_check_branch
    %23 = sbr.rel (0) target = $region21
  $region20: #{bipartite_gcn_forward.1} parent=0 // pred_region
    _
  $region21: #{bipartite_gcn_forward.1} parent=0 // pred_fallthru
    _
  // Predicated region
  $region22: #{bipartite_gcn_forward.1} parent=0 // pred_check
    _
  $region23: #{bipartite_gcn_forward.1} parent=0 // pred_check_branch
    %25 = sbr.rel (0) target = $region25
  $region24: #{bipartite_gcn_forward.1} parent=0 // pred_region
    _
  $region25: #{bipartite_gcn_forward.1} parent=0 // pred_fallthru
    _
  // Predicated region
  $region26: #{bipartite_gcn_forward.1} parent=0 // pred_check
    _
  $region27: #{bipartite_gcn_forward.1} parent=0 // pred_check_branch
    %27 = sbr.rel (0) target = $region29
  $region28: #{bipartite_gcn_forward.1} parent=0 // pred_region
    _
  $region29: #{bipartite_gcn_forward.1} parent=0 // pred_fallthru
    _
  %v28 = vld [vmem:[%s0] sm:$0xf]
  %v29 = vld [vmem:[%s0 + $0x4] sm:$0xf]
  %v30 = vld [vmem:[%s0 + $0x8] sm:$0xf]
  %v31 = vld [vmem:[%s0 + $0xc] sm:$0xf]
  %v32 = vld [vmem:[%s0 + $0x10] sm:$0xf]
  %v33 = vld [vmem:[%s0 + $0x14] sm:$0xf]
  %v34 = vld [vmem:[%s0 + $0x18] sm:$0xf]
  %v35 = vld [vmem:[%s0 + $0x1c] sm:$0xf]
  %v36 = vld [vmem:[%s0 + $0x20] sm:$0xf]
  %v37 = vld [vmem:[%s0 + $0x24] sm:$0xf]
  %v38 = vld [vmem:[%s0 + $0x28] sm:$0xf]
  %v39 = vld [vmem:[%s0 + $0x2c] sm:$0xf]
  %v40 = vld [vmem:[%s0 + $0x30] sm:$0xf]
  %v41 = vld [vmem:[%s0 + $0x34] sm:$0xf]
  %v42 = vld [vmem:[%s0 + $0x38] sm:$0xf]
  %v43 = vld [vmem:[%s0 + $0x3c] sm:$0xf]
  %v60 = vunpack.c.l.b16 %v28
  %v61 = vunpack.c.l.b16 %v29
  %v62 = vunpack.c.l.b16 %v30
  %v63 = vunpack.c.l.b16 %v31
  %v64 = vunpack.c.l.b16 %v32
  %v65 = vunpack.c.l.b16 %v33
  %v66 = vunpack.c.l.b16 %v34
  %v67 = vunpack.c.l.b16 %v35
  %v68 = vunpack.c.l.b16 %v36
  %v69 = vunpack.c.l.b16 %v37
  %v70 = vunpack.c.l.b16 %v38
  %v71 = vunpack.c.l.b16 %v39
  %v72 = vunpack.c.l.b16 %v40
  %v73 = vunpack.c.l.b16 %v41
  %v74 = vunpack.c.l.b16 %v42
  %v75 = vunpack.c.l.b16 %v43
  %v76 = vpack.c.b16 %v61, %v60
  %v77 = vpack.c.b16 %v63, %v62
  %v78 = vpack.c.b16 %v65, %v64
  %v79 = vpack.c.b16 %v67, %v66
  %v80 = vpack.c.b16 %v69, %v68
  %v81 = vpack.c.b16 %v71, %v70
  %v82 = vpack.c.b16 %v73, %v72
  %v83 = vpack.c.b16 %v75, %v74
  %92 = vxpose.xlu0.c.b16.start [1/8] %v76, 128
  %93 = vxpose.xlu0.c.b16.cont [2/8] %v77, 128
  %94 = vxpose.xlu0.c.b16.cont [3/8] %v78, 128
  %95 = vxpose.xlu0.c.b16.cont [4/8] %v79, 128
  %96 = vxpose.xlu0.c.b16.cont [5/8] %v80, 128
  %97 = vxpose.xlu0.c.b16.cont [6/8] %v81, 128
  %98 = vxpose.xlu0.c.b16.cont [7/8] %v82, 128
  %99 = vxpose.xlu0.c.b16.end [8/8] %v83, 128
  %v100 = vpop.trf.xlu0
  %v101 = vpop.trf.xlu0
  %v102 = vpop.trf.xlu0
  %v103 = vpop.trf.xlu0
  %v104 = vpop.trf.xlu0
  %v105 = vpop.trf.xlu0
  %v106 = vpop.trf.xlu0
  %v107 = vpop.trf.xlu0
  %v108 = vld [vmem:[%s1] sm:$0xff]
  %v109 = vld [vmem:[%s1 + $0x8] sm:$0xff]
  %v110 = vld [vmem:[%s1 + $0x10] sm:$0xff]
  %v111 = vld [vmem:[%s1 + $0x18] sm:$0xff]
  %v112 = vld [vmem:[%s1 + $0x20] sm:$0xff]
  %v113 = vld [vmem:[%s1 + $0x28] sm:$0xff]
  %v114 = vld [vmem:[%s1 + $0x30] sm:$0xff]
  %v115 = vld [vmem:[%s1 + $0x38] sm:$0xff]
  %v116 = vld [vmem:[%s1 + $0x40] sm:$0xff]
  %v117 = vld [vmem:[%s1 + $0x48] sm:$0xff]
  %v118 = vld [vmem:[%s1 + $0x50] sm:$0xff]
  %v119 = vld [vmem:[%s1 + $0x58] sm:$0xff]
  %v120 = vld [vmem:[%s1 + $0x60] sm:$0xff]
  %v121 = vld [vmem:[%s1 + $0x68] sm:$0xff]
  %v122 = vld [vmem:[%s1 + $0x70] sm:$0xff]
  %v123 = vld [vmem:[%s1 + $0x78] sm:$0xff]
  %v124 = vld [vmem:[%s2] sm:$0xff]
  %v125 = vld [vmem:[%s2 + $0x8] sm:$0xff]
  %v126 = vld [vmem:[%s2 + $0x10] sm:$0xff]
  %v127 = vld [vmem:[%s2 + $0x18] sm:$0xff]
  %v128 = vld [vmem:[%s2 + $0x20] sm:$0xff]
  %v129 = vld [vmem:[%s2 + $0x28] sm:$0xff]
  %v130 = vld [vmem:[%s2 + $0x30] sm:$0xff]
  %v131 = vld [vmem:[%s2 + $0x38] sm:$0xff]
  %v132 = vld [vmem:[%s2 + $0x40] sm:$0xff]
  %v133 = vld [vmem:[%s2 + $0x48] sm:$0xff]
  %v134 = vld [vmem:[%s2 + $0x50] sm:$0xff]
  %v135 = vld [vmem:[%s2 + $0x58] sm:$0xff]
  %v136 = vld [vmem:[%s2 + $0x60] sm:$0xff]
  %v137 = vld [vmem:[%s2 + $0x68] sm:$0xff]
  %v138 = vld [vmem:[%s2 + $0x70] sm:$0xff]
  %v139 = vld [vmem:[%s2 + $0x78] sm:$0xff]
  %v140 = vld [vmem:[%s3] sm:$0xf]
  %v141 = vld [vmem:[%s3 + $0x4] sm:$0xf]
  %v142 = vld [vmem:[%s3 + $0x8] sm:$0xf]
  %v143 = vld [vmem:[%s3 + $0xc] sm:$0xf]
  %v144 = vld [vmem:[%s3 + $0x10] sm:$0xf]
  %v145 = vld [vmem:[%s3 + $0x14] sm:$0xf]
  %v146 = vld [vmem:[%s3 + $0x18] sm:$0xf]
  %v147 = vld [vmem:[%s3 + $0x1c] sm:$0xf]
  %v148 = vld [vmem:[%s3 + $0x20] sm:$0xf]
  %v149 = vld [vmem:[%s3 + $0x24] sm:$0xf]
  %v150 = vld [vmem:[%s3 + $0x28] sm:$0xf]
  %v151 = vld [vmem:[%s3 + $0x2c] sm:$0xf]
  %v152 = vld [vmem:[%s3 + $0x30] sm:$0xf]
  %v153 = vld [vmem:[%s3 + $0x34] sm:$0xf]
  %v154 = vld [vmem:[%s3 + $0x38] sm:$0xf]
  %v155 = vld [vmem:[%s3 + $0x3c] sm:$0xf]
  %v156 = vld [vmem:[%s4] sm:$0xf]
  %v157 = vld [vmem:[%s4 + $0x4] sm:$0xf]
  %v158 = vld [vmem:[%s4 + $0x8] sm:$0xf]
  %v159 = vld [vmem:[%s4 + $0xc] sm:$0xf]
  %v160 = vld [vmem:[%s4 + $0x10] sm:$0xf]
  %v161 = vld [vmem:[%s4 + $0x14] sm:$0xf]
  %v162 = vld [vmem:[%s4 + $0x18] sm:$0xf]
  %v163 = vld [vmem:[%s4 + $0x1c] sm:$0xf]
  %v164 = vld [vmem:[%s4 + $0x20] sm:$0xf]
  %v165 = vld [vmem:[%s4 + $0x24] sm:$0xf]
  %v166 = vld [vmem:[%s4 + $0x28] sm:$0xf]
  %v167 = vld [vmem:[%s4 + $0x2c] sm:$0xf]
  %v168 = vld [vmem:[%s4 + $0x30] sm:$0xf]
  %v169 = vld [vmem:[%s4 + $0x34] sm:$0xf]
  %v170 = vld [vmem:[%s4 + $0x38] sm:$0xf]
  %v171 = vld [vmem:[%s4 + $0x3c] sm:$0xf]
  %v172 = vld [vmem:[%s5] sm:$0xf]
  %v173 = vld [vmem:[%s5 + $0x4] sm:$0xf]
  %v174 = vld [vmem:[%s5 + $0x8] sm:$0xf]
  %v175 = vld [vmem:[%s5 + $0xc] sm:$0xf]
  %v176 = vld [vmem:[%s5 + $0x10] sm:$0xf]
  %v177 = vld [vmem:[%s5 + $0x14] sm:$0xf]
  %v178 = vld [vmem:[%s5 + $0x18] sm:$0xf]
  %v179 = vld [vmem:[%s5 + $0x1c] sm:$0xf]
  %v180 = vld [vmem:[%s5 + $0x20] sm:$0xf]
  %v181 = vld [vmem:[%s5 + $0x24] sm:$0xf]
  %v182 = vld [vmem:[%s5 + $0x28] sm:$0xf]
  %v183 = vld [vmem:[%s5 + $0x2c] sm:$0xf]
  %v184 = vld [vmem:[%s5 + $0x30] sm:$0xf]
  %v185 = vld [vmem:[%s5 + $0x34] sm:$0xf]
  %v186 = vld [vmem:[%s5 + $0x38] sm:$0xf]
  %v187 = vld [vmem:[%s5 + $0x3c] sm:$0xf]
  %v188 = vld [vmem:[%s6] sm:$0xf]
  %v189 = vld [vmem:[%s6 + $0x4] sm:$0xf]
  %v190 = vld [vmem:[%s6 + $0x8] sm:$0xf]
  %v191 = vld [vmem:[%s6 + $0xc] sm:$0xf]
  %v192 = vld [vmem:[%s6 + $0x10] sm:$0xf]
  %v193 = vld [vmem:[%s6 + $0x14] sm:$0xf]
  %v194 = vld [vmem:[%s6 + $0x18] sm:$0xf]
  %v195 = vld [vmem:[%s6 + $0x1c] sm:$0xf]
  %v196 = vld [vmem:[%s6 + $0x20] sm:$0xf]
  %v197 = vld [vmem:[%s6 + $0x24] sm:$0xf]
  %v198 = vld [vmem:[%s6 + $0x28] sm:$0xf]
  %v199 = vld [vmem:[%s6 + $0x2c] sm:$0xf]
  %v200 = vld [vmem:[%s6 + $0x30] sm:$0xf]
  %v201 = vld [vmem:[%s6 + $0x34] sm:$0xf]
  %v202 = vld [vmem:[%s6 + $0x38] sm:$0xf]
  %v203 = vld [vmem:[%s6 + $0x3c] sm:$0xf]
  %v220 = vunpack.c.l.b16 %v140
  %v221 = vunpack.c.l.b16 %v141
  %v222 = vunpack.c.l.b16 %v142
  %v223 = vunpack.c.l.b16 %v143
  %v224 = vunpack.c.l.b16 %v144
  %v225 = vunpack.c.l.b16 %v145
  %v226 = vunpack.c.l.b16 %v146
  %v227 = vunpack.c.l.b16 %v147
  %v228 = vunpack.c.l.b16 %v148
  %v229 = vunpack.c.l.b16 %v149
  %v230 = vunpack.c.l.b16 %v150
  %v231 = vunpack.c.l.b16 %v151
  %v232 = vunpack.c.l.b16 %v152
  %v233 = vunpack.c.l.b16 %v153
  %v234 = vunpack.c.l.b16 %v154
  %v235 = vunpack.c.l.b16 %v155
  %v236 = vpack.c.b16 %v221, %v220
  %v237 = vpack.c.b16 %v223, %v222
  %v238 = vpack.c.b16 %v225, %v224
  %v239 = vpack.c.b16 %v227, %v226
  %v240 = vpack.c.b16 %v229, %v228
  %v241 = vpack.c.b16 %v231, %v230
  %v242 = vpack.c.b16 %v233, %v232
  %v243 = vpack.c.b16 %v235, %v234
  %v268 = vunpack.c.l.b16 %v172
  %v269 = vunpack.c.l.b16 %v173
  %v270 = vunpack.c.l.b16 %v174
  %v271 = vunpack.c.l.b16 %v175
  %v272 = vunpack.c.l.b16 %v176
  %v273 = vunpack.c.l.b16 %v177
  %v274 = vunpack.c.l.b16 %v178
  %v275 = vunpack.c.l.b16 %v179
  %v276 = vunpack.c.l.b16 %v180
  %v277 = vunpack.c.l.b16 %v181
  %v278 = vunpack.c.l.b16 %v182
  %v279 = vunpack.c.l.b16 %v183
  %v280 = vunpack.c.l.b16 %v184
  %v281 = vunpack.c.l.b16 %v185
  %v282 = vunpack.c.l.b16 %v186
  %v283 = vunpack.c.l.b16 %v187
  %v284 = vpack.c.b16 %v269, %v268
  %v285 = vpack.c.b16 %v271, %v270
  %v286 = vpack.c.b16 %v273, %v272
  %v287 = vpack.c.b16 %v275, %v274
  %v288 = vpack.c.b16 %v277, %v276
  %v289 = vpack.c.b16 %v279, %v278
  %v290 = vpack.c.b16 %v281, %v280
  %v291 = vpack.c.b16 %v283, %v282
  %300 = vmatpush.bf16.msra.mxu0 %v291
  %301 = vmatpush.bf16.msra.mxu0 %v290
  %302 = vmatpush.bf16.msra.mxu0 %v289
  %303 = vmatpush.bf16.msra.mxu0 %v288
  %304 = vmatpush.bf16.msra.mxu0 %v287
  %305 = vmatpush.bf16.msra.mxu0 %v286
  %306 = vmatpush.bf16.msra.mxu0 %v285
  %307 = vmatpush.bf16.msra.mxu0 %v284
  %308 = vmatmul.bf16.gmra.mxu0 %v236
  %v309 = vpop.f32.mrf.mxu0
  %v310 = vadd.f32 0.0, %v309
  %v311 = vpop.f32.mrf.mxu0
  %v312 = vadd.f32 0.0, %v311
  %313 = vmatmul.bf16.gmra.mxu0 %v237
  %v314 = vpop.f32.mrf.mxu0
  %v315 = vadd.f32 0.0, %v314
  %v316 = vpop.f32.mrf.mxu0
  %v317 = vadd.f32 0.0, %v316
  %318 = vmatmul.bf16.gmra.mxu0 %v238
  %v319 = vpop.f32.mrf.mxu0
  %v320 = vadd.f32 0.0, %v319
  %v321 = vpop.f32.mrf.mxu0
  %v322 = vadd.f32 0.0, %v321
  %323 = vmatmul.bf16.gmra.mxu0 %v239
  %v324 = vpop.f32.mrf.mxu0
  %v325 = vadd.f32 0.0, %v324
  %v326 = vpop.f32.mrf.mxu0
  %v327 = vadd.f32 0.0, %v326
  %328 = vmatmul.bf16.gmra.mxu0 %v240
  %v329 = vpop.f32.mrf.mxu0
  %v330 = vadd.f32 0.0, %v329
  %v331 = vpop.f32.mrf.mxu0
  %v332 = vadd.f32 0.0, %v331
  %333 = vmatmul.bf16.gmra.mxu0 %v241
  %v334 = vpop.f32.mrf.mxu0
  %v335 = vadd.f32 0.0, %v334
  %v336 = vpop.f32.mrf.mxu0
  %v337 = vadd.f32 0.0, %v336
  %338 = vmatmul.bf16.gmra.mxu0 %v242
  %v339 = vpop.f32.mrf.mxu0
  %v340 = vadd.f32 0.0, %v339
  %v341 = vpop.f32.mrf.mxu0
  %v342 = vadd.f32 0.0, %v341
  %343 = vmatmul.bf16.gmra.mxu0 %v243
  %v344 = vpop.f32.mrf.mxu0
  %v345 = vadd.f32 0.0, %v344
  %v346 = vpop.f32.mrf.mxu0
  %v347 = vadd.f32 0.0, %v346
  %348 = vdwg.mxu0
  %v349 = vpack.c.bf16 %v312, %v310
  %v350 = vpack.c.bf16 %v317, %v315
  %v351 = vpack.c.bf16 %v322, %v320
  %v352 = vpack.c.bf16 %v327, %v325
  %v353 = vpack.c.bf16 %v332, %v330
  %v354 = vpack.c.bf16 %v337, %v335
  %v355 = vpack.c.bf16 %v342, %v340
  %v356 = vpack.c.bf16 %v347, %v345
  %357 = vmatpush.bf16.msra.mxu0 %v356
  %358 = vmatpush.bf16.msra.mxu0 %v355
  %359 = vmatpush.bf16.msra.mxu0 %v354
  %360 = vmatpush.bf16.msra.mxu0 %v353
  %361 = vmatpush.bf16.msra.mxu0 %v352
  %362 = vmatpush.bf16.msra.mxu0 %v351
  %363 = vmatpush.bf16.msra.mxu0 %v350
  %364 = vmatpush.bf16.msra.mxu0 %v349
  %365 = vmatmul.bf16.gmra.mxu0 %v100
  %v366 = vpop.f32.mrf.mxu0
  %v367 = vadd.f32 0.0, %v366
  %v368 = vpop.f32.mrf.mxu0
  %v369 = vadd.f32 0.0, %v368
  %370 = vmatmul.bf16.gmra.mxu0 %v101
  %v371 = vpop.f32.mrf.mxu0
  %v372 = vadd.f32 0.0, %v371
  %v373 = vpop.f32.mrf.mxu0
  %v374 = vadd.f32 0.0, %v373
  %375 = vmatmul.bf16.gmra.mxu0 %v102
  %v376 = vpop.f32.mrf.mxu0
  %v377 = vadd.f32 0.0, %v376
  %v378 = vpop.f32.mrf.mxu0
  %v379 = vadd.f32 0.0, %v378
  %380 = vmatmul.bf16.gmra.mxu0 %v103
  %v381 = vpop.f32.mrf.mxu0
  %v382 = vadd.f32 0.0, %v381
  %v383 = vpop.f32.mrf.mxu0
  %v384 = vadd.f32 0.0, %v383
  %385 = vmatmul.bf16.gmra.mxu0 %v104
  %v386 = vpop.f32.mrf.mxu0
  %v387 = vadd.f32 0.0, %v386
  %v388 = vpop.f32.mrf.mxu0
  %v389 = vadd.f32 0.0, %v388
  %390 = vmatmul.bf16.gmra.mxu0 %v105
  %v391 = vpop.f32.mrf.mxu0
  %v392 = vadd.f32 0.0, %v391
  %v393 = vpop.f32.mrf.mxu0
  %v394 = vadd.f32 0.0, %v393
  %395 = vmatmul.bf16.gmra.mxu0 %v106
  %v396 = vpop.f32.mrf.mxu0
  %v397 = vadd.f32 0.0, %v396
  %v398 = vpop.f32.mrf.mxu0
  %v399 = vadd.f32 0.0, %v398
  %400 = vmatmul.bf16.gmra.mxu0 %v107
  %v401 = vpop.f32.mrf.mxu0
  %v402 = vadd.f32 0.0, %v401
  %v403 = vpop.f32.mrf.mxu0
  %v404 = vadd.f32 0.0, %v403
  %405 = vdwg.mxu0
  %407 = vset.pattern.permute.xlu0 0
  %408 = vperm.xlu0 %407, %v124
  %v409 = vpop.permute.xlu0 %408
  %412 = vset.pattern.permute.xlu0 0
  %413 = vperm.xlu0 %412, %v125
  %v414 = vpop.permute.xlu0 %413
  %417 = vset.pattern.permute.xlu0 0
  %418 = vperm.xlu0 %417, %v126
  %v419 = vpop.permute.xlu0 %418
  %422 = vset.pattern.permute.xlu0 0
  %423 = vperm.xlu0 %422, %v127
  %v424 = vpop.permute.xlu0 %423
  %427 = vset.pattern.permute.xlu0 0
  %428 = vperm.xlu0 %427, %v128
  %v429 = vpop.permute.xlu0 %428
  %432 = vset.pattern.permute.xlu0 0
  %433 = vperm.xlu0 %432, %v129
  %v434 = vpop.permute.xlu0 %433
  %437 = vset.pattern.permute.xlu0 0
  %438 = vperm.xlu0 %437, %v130
  %v439 = vpop.permute.xlu0 %438
  %442 = vset.pattern.permute.xlu0 0
  %443 = vperm.xlu0 %442, %v131
  %v444 = vpop.permute.xlu0 %443
  %447 = vset.pattern.permute.xlu0 0
  %448 = vperm.xlu0 %447, %v132
  %v449 = vpop.permute.xlu0 %448
  %452 = vset.pattern.permute.xlu0 0
  %453 = vperm.xlu0 %452, %v133
  %v454 = vpop.permute.xlu0 %453
  %457 = vset.pattern.permute.xlu0 0
  %458 = vperm.xlu0 %457, %v134
  %v459 = vpop.permute.xlu0 %458
  %462 = vset.pattern.permute.xlu0 0
  %463 = vperm.xlu0 %462, %v135
  %v464 = vpop.permute.xlu0 %463
  %467 = vset.pattern.permute.xlu0 0
  %468 = vperm.xlu0 %467, %v136
  %v469 = vpop.permute.xlu0 %468
  %472 = vset.pattern.permute.xlu0 0
  %473 = vperm.xlu0 %472, %v137
  %v474 = vpop.permute.xlu0 %473
  %477 = vset.pattern.permute.xlu0 0
  %478 = vperm.xlu0 %477, %v138
  %v479 = vpop.permute.xlu0 %478
  %482 = vset.pattern.permute.xlu0 0
  %483 = vperm.xlu0 %482, %v139
  %v484 = vpop.permute.xlu0 %483
  %v486 = vmul.f32 %v409, %v367
  %v487 = vmul.f32 %v414, %v369
  %v488 = vmul.f32 %v419, %v372
  %v489 = vmul.f32 %v424, %v374
  %v490 = vmul.f32 %v429, %v377
  %v491 = vmul.f32 %v434, %v379
  %v492 = vmul.f32 %v439, %v382
  %v493 = vmul.f32 %v444, %v384
  %v494 = vmul.f32 %v449, %v387
  %v495 = vmul.f32 %v454, %v389
  %v496 = vmul.f32 %v459, %v392
  %v497 = vmul.f32 %v464, %v394
  %v498 = vmul.f32 %v469, %v397
  %v499 = vmul.f32 %v474, %v399
  %v500 = vmul.f32 %v479, %v402
  %v501 = vmul.f32 %v484, %v404
  %v518 = vunpack.c.l.b16 %v156
  %v519 = vunpack.c.l.b16 %v157
  %v520 = vunpack.c.l.b16 %v158
  %v521 = vunpack.c.l.b16 %v159
  %v522 = vunpack.c.l.b16 %v160
  %v523 = vunpack.c.l.b16 %v161
  %v524 = vunpack.c.l.b16 %v162
  %v525 = vunpack.c.l.b16 %v163
  %v526 = vunpack.c.l.b16 %v164
  %v527 = vunpack.c.l.b16 %v165
  %v528 = vunpack.c.l.b16 %v166
  %v529 = vunpack.c.l.b16 %v167
  %v530 = vunpack.c.l.b16 %v168
  %v531 = vunpack.c.l.b16 %v169
  %v532 = vunpack.c.l.b16 %v170
  %v533 = vunpack.c.l.b16 %v171
  %v534 = vpack.c.b16 %v519, %v518
  %v535 = vpack.c.b16 %v521, %v520
  %v536 = vpack.c.b16 %v523, %v522
  %v537 = vpack.c.b16 %v525, %v524
  %v538 = vpack.c.b16 %v527, %v526
  %v539 = vpack.c.b16 %v529, %v528
  %v540 = vpack.c.b16 %v531, %v530
  %v541 = vpack.c.b16 %v533, %v532
  %v566 = vunpack.c.l.b16 %v188
  %v567 = vunpack.c.l.b16 %v189
  %v568 = vunpack.c.l.b16 %v190
  %v569 = vunpack.c.l.b16 %v191
  %v570 = vunpack.c.l.b16 %v192
  %v571 = vunpack.c.l.b16 %v193
  %v572 = vunpack.c.l.b16 %v194
  %v573 = vunpack.c.l.b16 %v195
  %v574 = vunpack.c.l.b16 %v196
  %v575 = vunpack.c.l.b16 %v197
  %v576 = vunpack.c.l.b16 %v198
  %v577 = vunpack.c.l.b16 %v199
  %v578 = vunpack.c.l.b16 %v200
  %v579 = vunpack.c.l.b16 %v201
  %v580 = vunpack.c.l.b16 %v202
  %v581 = vunpack.c.l.b16 %v203
  %v582 = vpack.c.b16 %v567, %v566
  %v583 = vpack.c.b16 %v569, %v568
  %v584 = vpack.c.b16 %v571, %v570
  %v585 = vpack.c.b16 %v573, %v572
  %v586 = vpack.c.b16 %v575, %v574
  %v587 = vpack.c.b16 %v577, %v576
  %v588 = vpack.c.b16 %v579, %v578
  %v589 = vpack.c.b16 %v581, %v580
  %598 = vmatpush.bf16.msra.mxu0 %v589
  %599 = vmatpush.bf16.msra.mxu0 %v588
  %600 = vmatpush.bf16.msra.mxu0 %v587
  %601 = vmatpush.bf16.msra.mxu0 %v586
  %602 = vmatpush.bf16.msra.mxu0 %v585
  %603 = vmatpush.bf16.msra.mxu0 %v584
  %604 = vmatpush.bf16.msra.mxu0 %v583
  %605 = vmatpush.bf16.msra.mxu0 %v582
  %606 = vmatmul.bf16.gmra.mxu0 %v534
  %v607 = vpop.f32.mrf.mxu0
  %v608 = vadd.f32 0.0, %v607
  %v609 = vpop.f32.mrf.mxu0
  %v610 = vadd.f32 0.0, %v609
  %611 = vmatmul.bf16.gmra.mxu0 %v535
  %v612 = vpop.f32.mrf.mxu0
  %v613 = vadd.f32 0.0, %v612
  %v614 = vpop.f32.mrf.mxu0
  %v615 = vadd.f32 0.0, %v614
  %616 = vmatmul.bf16.gmra.mxu0 %v536
  %v617 = vpop.f32.mrf.mxu0
  %v618 = vadd.f32 0.0, %v617
  %v619 = vpop.f32.mrf.mxu0
  %v620 = vadd.f32 0.0, %v619
  %621 = vmatmul.bf16.gmra.mxu0 %v537
  %v622 = vpop.f32.mrf.mxu0
  %v623 = vadd.f32 0.0, %v622
  %v624 = vpop.f32.mrf.mxu0
  %v625 = vadd.f32 0.0, %v624
  %626 = vmatmul.bf16.gmra.mxu0 %v538
  %v627 = vpop.f32.mrf.mxu0
  %v628 = vadd.f32 0.0, %v627
  %v629 = vpop.f32.mrf.mxu0
  %v630 = vadd.f32 0.0, %v629
  %631 = vmatmul.bf16.gmra.mxu0 %v539
  %v632 = vpop.f32.mrf.mxu0
  %v633 = vadd.f32 0.0, %v632
  %v634 = vpop.f32.mrf.mxu0
  %v635 = vadd.f32 0.0, %v634
  %636 = vmatmul.bf16.gmra.mxu0 %v540
  %v637 = vpop.f32.mrf.mxu0
  %v638 = vadd.f32 0.0, %v637
  %v639 = vpop.f32.mrf.mxu0
  %v640 = vadd.f32 0.0, %v639
  %641 = vmatmul.bf16.gmra.mxu0 %v541
  %v642 = vpop.f32.mrf.mxu0
  %v643 = vadd.f32 0.0, %v642
  %v644 = vpop.f32.mrf.mxu0
  %v645 = vadd.f32 0.0, %v644
  %646 = vdwg.mxu0
  %v647 = vpack.c.bf16 %v610, %v608
  %v648 = vpack.c.bf16 %v615, %v613
  %v649 = vpack.c.bf16 %v620, %v618
  %v650 = vpack.c.bf16 %v625, %v623
  %v651 = vpack.c.bf16 %v630, %v628
  %v652 = vpack.c.bf16 %v635, %v633
  %v653 = vpack.c.bf16 %v640, %v638
  %v654 = vpack.c.bf16 %v645, %v643
  %655 = vmatpush.bf16.msra.mxu0 %v654
  %656 = vmatpush.bf16.msra.mxu0 %v653
  %657 = vmatpush.bf16.msra.mxu0 %v652
  %658 = vmatpush.bf16.msra.mxu0 %v651
  %659 = vmatpush.bf16.msra.mxu0 %v650
  %660 = vmatpush.bf16.msra.mxu0 %v649
  %661 = vmatpush.bf16.msra.mxu0 %v648
  %662 = vmatpush.bf16.msra.mxu0 %v647
  %663 = vmatmul.bf16.gmra.mxu0 %v76
  %v664 = vpop.f32.mrf.mxu0
  %v665 = vadd.f32 0.0, %v664
  %v666 = vpop.f32.mrf.mxu0
  %v667 = vadd.f32 0.0, %v666
  %668 = vmatmul.bf16.gmra.mxu0 %v77
  %v669 = vpop.f32.mrf.mxu0
  %v670 = vadd.f32 0.0, %v669
  %v671 = vpop.f32.mrf.mxu0
  %v672 = vadd.f32 0.0, %v671
  %673 = vmatmul.bf16.gmra.mxu0 %v78
  %v674 = vpop.f32.mrf.mxu0
  %v675 = vadd.f32 0.0, %v674
  %v676 = vpop.f32.mrf.mxu0
  %v677 = vadd.f32 0.0, %v676
  %678 = vmatmul.bf16.gmra.mxu0 %v79
  %v679 = vpop.f32.mrf.mxu0
  %v680 = vadd.f32 0.0, %v679
  %v681 = vpop.f32.mrf.mxu0
  %v682 = vadd.f32 0.0, %v681
  %683 = vmatmul.bf16.gmra.mxu0 %v80
  %v684 = vpop.f32.mrf.mxu0
  %v685 = vadd.f32 0.0, %v684
  %v686 = vpop.f32.mrf.mxu0
  %v687 = vadd.f32 0.0, %v686
  %688 = vmatmul.bf16.gmra.mxu0 %v81
  %v689 = vpop.f32.mrf.mxu0
  %v690 = vadd.f32 0.0, %v689
  %v691 = vpop.f32.mrf.mxu0
  %v692 = vadd.f32 0.0, %v691
  %693 = vmatmul.bf16.gmra.mxu0 %v82
  %v694 = vpop.f32.mrf.mxu0
  %v695 = vadd.f32 0.0, %v694
  %v696 = vpop.f32.mrf.mxu0
  %v697 = vadd.f32 0.0, %v696
  %698 = vmatmul.bf16.gmra.mxu0 %v83
  %v699 = vpop.f32.mrf.mxu0
  %v700 = vadd.f32 0.0, %v699
  %v701 = vpop.f32.mrf.mxu0
  %v702 = vadd.f32 0.0, %v701
  %703 = vdwg.mxu0
  %705 = vset.pattern.permute.xlu0 0
  %706 = vperm.xlu0 %705, %v108
  %v707 = vpop.permute.xlu0 %706
  %710 = vset.pattern.permute.xlu0 0
  %711 = vperm.xlu0 %710, %v109
  %v712 = vpop.permute.xlu0 %711
  %715 = vset.pattern.permute.xlu0 0
  %716 = vperm.xlu0 %715, %v110
  %v717 = vpop.permute.xlu0 %716
  %720 = vset.pattern.permute.xlu0 0
  %721 = vperm.xlu0 %720, %v111
  %v722 = vpop.permute.xlu0 %721
  %725 = vset.pattern.permute.xlu0 0
  %726 = vperm.xlu0 %725, %v112
  %v727 = vpop.permute.xlu0 %726
  %730 = vset.pattern.permute.xlu0 0
  %731 = vperm.xlu0 %730, %v113
  %v732 = vpop.permute.xlu0 %731
  %735 = vset.pattern.permute.xlu0 0
  %736 = vperm.xlu0 %735, %v114
  %v737 = vpop.permute.xlu0 %736
  %740 = vset.pattern.permute.xlu0 0
  %741 = vperm.xlu0 %740, %v115
  %v742 = vpop.permute.xlu0 %741
  %745 = vset.pattern.permute.xlu0 0
  %746 = vperm.xlu0 %745, %v116
  %v747 = vpop.permute.xlu0 %746
  %750 = vset.pattern.permute.xlu0 0
  %751 = vperm.xlu0 %750, %v117
  %v752 = vpop.permute.xlu0 %751
  %755 = vset.pattern.permute.xlu0 0
  %756 = vperm.xlu0 %755, %v118
  %v757 = vpop.permute.xlu0 %756
  %760 = vset.pattern.permute.xlu0 0
  %761 = vperm.xlu0 %760, %v119
  %v762 = vpop.permute.xlu0 %761
  %765 = vset.pattern.permute.xlu0 0
  %766 = vperm.xlu0 %765, %v120
  %v767 = vpop.permute.xlu0 %766
  %770 = vset.pattern.permute.xlu0 0
  %771 = vperm.xlu0 %770, %v121
  %v772 = vpop.permute.xlu0 %771
  %775 = vset.pattern.permute.xlu0 0
  %776 = vperm.xlu0 %775, %v122
  %v777 = vpop.permute.xlu0 %776
  %780 = vset.pattern.permute.xlu0 0
  %781 = vperm.xlu0 %780, %v123
  %v782 = vpop.permute.xlu0 %781
  %v784 = vmul.f32 %v707, %v665
  %v785 = vmul.f32 %v712, %v667
  %v786 = vmul.f32 %v717, %v670
  %v787 = vmul.f32 %v722, %v672
  %v788 = vmul.f32 %v727, %v675
  %v789 = vmul.f32 %v732, %v677
  %v790 = vmul.f32 %v737, %v680
  %v791 = vmul.f32 %v742, %v682
  %v792 = vmul.f32 %v747, %v685
  %v793 = vmul.f32 %v752, %v687
  %v794 = vmul.f32 %v757, %v690
  %v795 = vmul.f32 %v762, %v692
  %v796 = vmul.f32 %v767, %v695
  %v797 = vmul.f32 %v772, %v697
  %v798 = vmul.f32 %v777, %v700
  %v799 = vmul.f32 %v782, %v702
  %v800 = vpack.c.bf16 %v785, %v784
  %v801 = vpack.c.bf16 %v787, %v786
  %v802 = vpack.c.bf16 %v789, %v788
  %v803 = vpack.c.bf16 %v791, %v790
  %v804 = vpack.c.bf16 %v793, %v792
  %v805 = vpack.c.bf16 %v795, %v794
  %v806 = vpack.c.bf16 %v797, %v796
  %v807 = vpack.c.bf16 %v799, %v798
  %808 = vmatpush.bf16.msra.mxu0 %v291
  %809 = vmatpush.bf16.msra.mxu0 %v290
  %810 = vmatpush.bf16.msra.mxu0 %v289
  %811 = vmatpush.bf16.msra.mxu0 %v288
  %812 = vmatpush.bf16.msra.mxu0 %v287
  %813 = vmatpush.bf16.msra.mxu0 %v286
  %814 = vmatpush.bf16.msra.mxu0 %v285
  %815 = vmatpush.bf16.msra.mxu0 %v284
  %816 = vmatmul.bf16.gmra.mxu0 %v800
  %v817 = vpop.f32.mrf.mxu0
  %v818 = vadd.f32 0.0, %v817
  %v819 = vpop.f32.mrf.mxu0
  %v820 = vadd.f32 0.0, %v819
  %821 = vmatmul.bf16.gmra.mxu0 %v801
  %v822 = vpop.f32.mrf.mxu0
  %v823 = vadd.f32 0.0, %v822
  %v824 = vpop.f32.mrf.mxu0
  %v825 = vadd.f32 0.0, %v824
  %826 = vmatmul.bf16.gmra.mxu0 %v802
  %v827 = vpop.f32.mrf.mxu0
  %v828 = vadd.f32 0.0, %v827
  %v829 = vpop.f32.mrf.mxu0
  %v830 = vadd.f32 0.0, %v829
  %831 = vmatmul.bf16.gmra.mxu0 %v803
  %v832 = vpop.f32.mrf.mxu0
  %v833 = vadd.f32 0.0, %v832
  %v834 = vpop.f32.mrf.mxu0
  %v835 = vadd.f32 0.0, %v834
  %836 = vmatmul.bf16.gmra.mxu0 %v804
  %v837 = vpop.f32.mrf.mxu0
  %v838 = vadd.f32 0.0, %v837
  %v839 = vpop.f32.mrf.mxu0
  %v840 = vadd.f32 0.0, %v839
  %841 = vmatmul.bf16.gmra.mxu0 %v805
  %v842 = vpop.f32.mrf.mxu0
  %v843 = vadd.f32 0.0, %v842
  %v844 = vpop.f32.mrf.mxu0
  %v845 = vadd.f32 0.0, %v844
  %846 = vmatmul.bf16.gmra.mxu0 %v806
  %v847 = vpop.f32.mrf.mxu0
  %v848 = vadd.f32 0.0, %v847
  %v849 = vpop.f32.mrf.mxu0
  %v850 = vadd.f32 0.0, %v849
  %851 = vmatmul.bf16.gmra.mxu0 %v807
  %v852 = vpop.f32.mrf.mxu0
  %v853 = vadd.f32 0.0, %v852
  %v854 = vpop.f32.mrf.mxu0
  %v855 = vadd.f32 0.0, %v854
  %856 = vdwg.mxu0
  %v857 = vpack.c.bf16 %v820, %v818
  %v858 = vpack.c.bf16 %v825, %v823
  %v859 = vpack.c.bf16 %v830, %v828
  %v860 = vpack.c.bf16 %v835, %v833
  %v861 = vpack.c.bf16 %v840, %v838
  %v862 = vpack.c.bf16 %v845, %v843
  %v863 = vpack.c.bf16 %v850, %v848
  %v864 = vpack.c.bf16 %v855, %v853
  %865 = vmatpush.bf16.msra.mxu0 %v864
  %866 = vmatpush.bf16.msra.mxu0 %v863
  %867 = vmatpush.bf16.msra.mxu0 %v862
  %868 = vmatpush.bf16.msra.mxu0 %v861
  %869 = vmatpush.bf16.msra.mxu0 %v860
  %870 = vmatpush.bf16.msra.mxu0 %v859
  %871 = vmatpush.bf16.msra.mxu0 %v858
  %872 = vmatpush.bf16.msra.mxu0 %v857
  %873 = vmatmul.bf16.gmra.mxu0 %v100
  %v874 = vpop.f32.mrf.mxu0
  %v875 = vadd.f32 0.0, %v874
  %v876 = vpop.f32.mrf.mxu0
  %v877 = vadd.f32 0.0, %v876
  %878 = vmatmul.bf16.gmra.mxu0 %v101
  %v879 = vpop.f32.mrf.mxu0
  %v880 = vadd.f32 0.0, %v879
  %v881 = vpop.f32.mrf.mxu0
  %v882 = vadd.f32 0.0, %v881
  %883 = vmatmul.bf16.gmra.mxu0 %v102
  %v884 = vpop.f32.mrf.mxu0
  %v885 = vadd.f32 0.0, %v884
  %v886 = vpop.f32.mrf.mxu0
  %v887 = vadd.f32 0.0, %v886
  %888 = vmatmul.bf16.gmra.mxu0 %v103
  %v889 = vpop.f32.mrf.mxu0
  %v890 = vadd.f32 0.0, %v889
  %v891 = vpop.f32.mrf.mxu0
  %v892 = vadd.f32 0.0, %v891
  %893 = vmatmul.bf16.gmra.mxu0 %v104
  %v894 = vpop.f32.mrf.mxu0
  %v895 = vadd.f32 0.0, %v894
  %v896 = vpop.f32.mrf.mxu0
  %v897 = vadd.f32 0.0, %v896
  %898 = vmatmul.bf16.gmra.mxu0 %v105
  %v899 = vpop.f32.mrf.mxu0
  %v900 = vadd.f32 0.0, %v899
  %v901 = vpop.f32.mrf.mxu0
  %v902 = vadd.f32 0.0, %v901
  %903 = vmatmul.bf16.gmra.mxu0 %v106
  %v904 = vpop.f32.mrf.mxu0
  %v905 = vadd.f32 0.0, %v904
  %v906 = vpop.f32.mrf.mxu0
  %v907 = vadd.f32 0.0, %v906
  %908 = vmatmul.bf16.gmra.mxu0 %v107
  %v909 = vpop.f32.mrf.mxu0
  %v910 = vadd.f32 0.0, %v909
  %v911 = vpop.f32.mrf.mxu0
  %v912 = vadd.f32 0.0, %v911
  %913 = vdwg.mxu0
  %v914 = vmul.f32 %v409, %v875
  %v915 = vmul.f32 %v414, %v877
  %v916 = vmul.f32 %v419, %v880
  %v917 = vmul.f32 %v424, %v882
  %v918 = vmul.f32 %v429, %v885
  %v919 = vmul.f32 %v434, %v887
  %v920 = vmul.f32 %v439, %v890
  %v921 = vmul.f32 %v444, %v892
  %v922 = vmul.f32 %v449, %v895
  %v923 = vmul.f32 %v454, %v897
  %v924 = vmul.f32 %v459, %v900
  %v925 = vmul.f32 %v464, %v902
  %v926 = vmul.f32 %v469, %v905
  %v927 = vmul.f32 %v474, %v907
  %v928 = vmul.f32 %v479, %v910
  %v929 = vmul.f32 %v484, %v912
  %v930 = vpack.c.bf16 %v487, %v486
  %v931 = vpack.c.bf16 %v489, %v488
  %v932 = vpack.c.bf16 %v491, %v490
  %v933 = vpack.c.bf16 %v493, %v492
  %v934 = vpack.c.bf16 %v495, %v494
  %v935 = vpack.c.bf16 %v497, %v496
  %v936 = vpack.c.bf16 %v499, %v498
  %v937 = vpack.c.bf16 %v501, %v500
  %938 = vmatpush.bf16.msra.mxu0 %v589
  %939 = vmatpush.bf16.msra.mxu0 %v588
  %940 = vmatpush.bf16.msra.mxu0 %v587
  %941 = vmatpush.bf16.msra.mxu0 %v586
  %942 = vmatpush.bf16.msra.mxu0 %v585
  %943 = vmatpush.bf16.msra.mxu0 %v584
  %944 = vmatpush.bf16.msra.mxu0 %v583
  %945 = vmatpush.bf16.msra.mxu0 %v582
  %946 = vmatmul.bf16.gmra.mxu0 %v930
  %v947 = vpop.f32.mrf.mxu0
  %v948 = vadd.f32 0.0, %v947
  %v949 = vpop.f32.mrf.mxu0
  %v950 = vadd.f32 0.0, %v949
  %951 = vmatmul.bf16.gmra.mxu0 %v931
  %v952 = vpop.f32.mrf.mxu0
  %v953 = vadd.f32 0.0, %v952
  %v954 = vpop.f32.mrf.mxu0
  %v955 = vadd.f32 0.0, %v954
  %956 = vmatmul.bf16.gmra.mxu0 %v932
  %v957 = vpop.f32.mrf.mxu0
  %v958 = vadd.f32 0.0, %v957
  %v959 = vpop.f32.mrf.mxu0
  %v960 = vadd.f32 0.0, %v959
  %961 = vmatmul.bf16.gmra.mxu0 %v933
  %v962 = vpop.f32.mrf.mxu0
  %v963 = vadd.f32 0.0, %v962
  %v964 = vpop.f32.mrf.mxu0
  %v965 = vadd.f32 0.0, %v964
  %966 = vmatmul.bf16.gmra.mxu0 %v934
  %v967 = vpop.f32.mrf.mxu0
  %v968 = vadd.f32 0.0, %v967
  %v969 = vpop.f32.mrf.mxu0
  %v970 = vadd.f32 0.0, %v969
  %971 = vmatmul.bf16.gmra.mxu0 %v935
  %v972 = vpop.f32.mrf.mxu0
  %v973 = vadd.f32 0.0, %v972
  %v974 = vpop.f32.mrf.mxu0
  %v975 = vadd.f32 0.0, %v974
  %976 = vmatmul.bf16.gmra.mxu0 %v936
  %v977 = vpop.f32.mrf.mxu0
  %v978 = vadd.f32 0.0, %v977
  %v979 = vpop.f32.mrf.mxu0
  %v980 = vadd.f32 0.0, %v979
  %981 = vmatmul.bf16.gmra.mxu0 %v937
  %v982 = vpop.f32.mrf.mxu0
  %v983 = vadd.f32 0.0, %v982
  %v984 = vpop.f32.mrf.mxu0
  %v985 = vadd.f32 0.0, %v984
  %986 = vdwg.mxu0
  %v987 = vpack.c.bf16 %v950, %v948
  %v988 = vpack.c.bf16 %v955, %v953
  %v989 = vpack.c.bf16 %v960, %v958
  %v990 = vpack.c.bf16 %v965, %v963
  %v991 = vpack.c.bf16 %v970, %v968
  %v992 = vpack.c.bf16 %v975, %v973
  %v993 = vpack.c.bf16 %v980, %v978
  %v994 = vpack.c.bf16 %v985, %v983
  %995 = vmatpush.bf16.msra.mxu0 %v994
  %996 = vmatpush.bf16.msra.mxu0 %v993
  %997 = vmatpush.bf16.msra.mxu0 %v992
  %998 = vmatpush.bf16.msra.mxu0 %v991
  %999 = vmatpush.bf16.msra.mxu0 %v990
  %1000 = vmatpush.bf16.msra.mxu0 %v989
  %1001 = vmatpush.bf16.msra.mxu0 %v988
  %1002 = vmatpush.bf16.msra.mxu0 %v987
  %1003 = vmatmul.bf16.gmra.mxu0 %v76
  %v1004 = vpop.f32.mrf.mxu0
  %v1005 = vadd.f32 0.0, %v1004
  %v1006 = vpop.f32.mrf.mxu0
  %v1007 = vadd.f32 0.0, %v1006
  %1008 = vmatmul.bf16.gmra.mxu0 %v77
  %v1009 = vpop.f32.mrf.mxu0
  %v1010 = vadd.f32 0.0, %v1009
  %v1011 = vpop.f32.mrf.mxu0
  %v1012 = vadd.f32 0.0, %v1011
  %1013 = vmatmul.bf16.gmra.mxu0 %v78
  %v1014 = vpop.f32.mrf.mxu0
  %v1015 = vadd.f32 0.0, %v1014
  %v1016 = vpop.f32.mrf.mxu0
  %v1017 = vadd.f32 0.0, %v1016
  %1018 = vmatmul.bf16.gmra.mxu0 %v79
  %v1019 = vpop.f32.mrf.mxu0
  %v1020 = vadd.f32 0.0, %v1019
  %v1021 = vpop.f32.mrf.mxu0
  %v1022 = vadd.f32 0.0, %v1021
  %1023 = vmatmul.bf16.gmra.mxu0 %v80
  %v1024 = vpop.f32.mrf.mxu0
  %v1025 = vadd.f32 0.0, %v1024
  %v1026 = vpop.f32.mrf.mxu0
  %v1027 = vadd.f32 0.0, %v1026
  %1028 = vmatmul.bf16.gmra.mxu0 %v81
  %v1029 = vpop.f32.mrf.mxu0
  %v1030 = vadd.f32 0.0, %v1029
  %v1031 = vpop.f32.mrf.mxu0
  %v1032 = vadd.f32 0.0, %v1031
  %1033 = vmatmul.bf16.gmra.mxu0 %v82
  %v1034 = vpop.f32.mrf.mxu0
  %v1035 = vadd.f32 0.0, %v1034
  %v1036 = vpop.f32.mrf.mxu0
  %v1037 = vadd.f32 0.0, %v1036
  %1038 = vmatmul.bf16.gmra.mxu0 %v83
  %v1039 = vpop.f32.mrf.mxu0
  %v1040 = vadd.f32 0.0, %v1039
  %v1041 = vpop.f32.mrf.mxu0
  %v1042 = vadd.f32 0.0, %v1041
  %1043 = vdwg.mxu0
  %v1044 = vmul.f32 %v707, %v1005
  %v1045 = vmul.f32 %v712, %v1007
  %v1046 = vmul.f32 %v717, %v1010
  %v1047 = vmul.f32 %v722, %v1012
  %v1048 = vmul.f32 %v727, %v1015
  %v1049 = vmul.f32 %v732, %v1017
  %v1050 = vmul.f32 %v737, %v1020
  %v1051 = vmul.f32 %v742, %v1022
  %v1052 = vmul.f32 %v747, %v1025
  %v1053 = vmul.f32 %v752, %v1027
  %v1054 = vmul.f32 %v757, %v1030
  %v1055 = vmul.f32 %v762, %v1032
  %v1056 = vmul.f32 %v767, %v1035
  %v1057 = vmul.f32 %v772, %v1037
  %v1058 = vmul.f32 %v777, %v1040
  %v1059 = vmul.f32 %v782, %v1042
  %v1060 = vpack.c.bf16 %v1045, %v1044
  %v1061 = vpack.c.bf16 %v1047, %v1046
  %v1062 = vpack.c.bf16 %v1049, %v1048
  %v1063 = vpack.c.bf16 %v1051, %v1050
  %v1064 = vpack.c.bf16 %v1053, %v1052
  %v1065 = vpack.c.bf16 %v1055, %v1054
  %v1066 = vpack.c.bf16 %v1057, %v1056
  %v1067 = vpack.c.bf16 %v1059, %v1058
  %1068 = vmatpush.bf16.msra.mxu0 %v291
  %1069 = vmatpush.bf16.msra.mxu0 %v290
  %1070 = vmatpush.bf16.msra.mxu0 %v289
  %1071 = vmatpush.bf16.msra.mxu0 %v288
  %1072 = vmatpush.bf16.msra.mxu0 %v287
  %1073 = vmatpush.bf16.msra.mxu0 %v286
  %1074 = vmatpush.bf16.msra.mxu0 %v285
  %1075 = vmatpush.bf16.msra.mxu0 %v284
  %1076 = vmatmul.bf16.gmra.mxu0 %v1060
  %v1077 = vpop.f32.mrf.mxu0
  %v1078 = vadd.f32 0.0, %v1077
  %v1079 = vpop.f32.mrf.mxu0
  %v1080 = vadd.f32 0.0, %v1079
  %1081 = vmatmul.bf16.gmra.mxu0 %v1061
  %v1082 = vpop.f32.mrf.mxu0
  %v1083 = vadd.f32 0.0, %v1082
  %v1084 = vpop.f32.mrf.mxu0
  %v1085 = vadd.f32 0.0, %v1084
  %1086 = vmatmul.bf16.gmra.mxu0 %v1062
  %v1087 = vpop.f32.mrf.mxu0
  %v1088 = vadd.f32 0.0, %v1087
  %v1089 = vpop.f32.mrf.mxu0
  %v1090 = vadd.f32 0.0, %v1089
  %1091 = vmatmul.bf16.gmra.mxu0 %v1063
  %v1092 = vpop.f32.mrf.mxu0
  %v1093 = vadd.f32 0.0, %v1092
  %v1094 = vpop.f32.mrf.mxu0
  %v1095 = vadd.f32 0.0, %v1094
  %1096 = vmatmul.bf16.gmra.mxu0 %v1064
  %v1097 = vpop.f32.mrf.mxu0
  %v1098 = vadd.f32 0.0, %v1097
  %v1099 = vpop.f32.mrf.mxu0
  %v1100 = vadd.f32 0.0, %v1099
  %1101 = vmatmul.bf16.gmra.mxu0 %v1065
  %v1102 = vpop.f32.mrf.mxu0
  %v1103 = vadd.f32 0.0, %v1102
  %v1104 = vpop.f32.mrf.mxu0
  %v1105 = vadd.f32 0.0, %v1104
  %1106 = vmatmul.bf16.gmra.mxu0 %v1066
  %v1107 = vpop.f32.mrf.mxu0
  %v1108 = vadd.f32 0.0, %v1107
  %v1109 = vpop.f32.mrf.mxu0
  %v1110 = vadd.f32 0.0, %v1109
  %1111 = vmatmul.bf16.gmra.mxu0 %v1067
  %v1112 = vpop.f32.mrf.mxu0
  %v1113 = vadd.f32 0.0, %v1112
  %v1114 = vpop.f32.mrf.mxu0
  %v1115 = vadd.f32 0.0, %v1114
  %1116 = vdwg.mxu0
  %v1117 = vpack.c.bf16 %v1080, %v1078
  %v1118 = vpack.c.bf16 %v1085, %v1083
  %v1119 = vpack.c.bf16 %v1090, %v1088
  %v1120 = vpack.c.bf16 %v1095, %v1093
  %v1121 = vpack.c.bf16 %v1100, %v1098
  %v1122 = vpack.c.bf16 %v1105, %v1103
  %v1123 = vpack.c.bf16 %v1110, %v1108
  %v1124 = vpack.c.bf16 %v1115, %v1113
  %1125 = vmatpush.bf16.msra.mxu0 %v1124
  %1126 = vmatpush.bf16.msra.mxu0 %v1123
  %1127 = vmatpush.bf16.msra.mxu0 %v1122
  %1128 = vmatpush.bf16.msra.mxu0 %v1121
  %1129 = vmatpush.bf16.msra.mxu0 %v1120
  %1130 = vmatpush.bf16.msra.mxu0 %v1119
  %1131 = vmatpush.bf16.msra.mxu0 %v1118
  %1132 = vmatpush.bf16.msra.mxu0 %v1117
  %1133 = vmatmul.bf16.gmra.mxu0 %v100
  %v1134 = vpop.f32.mrf.mxu0
  %v1135 = vadd.f32 0.0, %v1134
  %v1136 = vpop.f32.mrf.mxu0
  %v1137 = vadd.f32 0.0, %v1136
  %1138 = vmatmul.bf16.gmra.mxu0 %v101
  %v1139 = vpop.f32.mrf.mxu0
  %v1140 = vadd.f32 0.0, %v1139
  %v1141 = vpop.f32.mrf.mxu0
  %v1142 = vadd.f32 0.0, %v1141
  %1143 = vmatmul.bf16.gmra.mxu0 %v102
  %v1144 = vpop.f32.mrf.mxu0
  %v1145 = vadd.f32 0.0, %v1144
  %v1146 = vpop.f32.mrf.mxu0
  %v1147 = vadd.f32 0.0, %v1146
  %1148 = vmatmul.bf16.gmra.mxu0 %v103
  %v1149 = vpop.f32.mrf.mxu0
  %v1150 = vadd.f32 0.0, %v1149
  %v1151 = vpop.f32.mrf.mxu0
  %v1152 = vadd.f32 0.0, %v1151
  %1153 = vmatmul.bf16.gmra.mxu0 %v104
  %v1154 = vpop.f32.mrf.mxu0
  %v1155 = vadd.f32 0.0, %v1154
  %v1156 = vpop.f32.mrf.mxu0
  %v1157 = vadd.f32 0.0, %v1156
  %1158 = vmatmul.bf16.gmra.mxu0 %v105
  %v1159 = vpop.f32.mrf.mxu0
  %v1160 = vadd.f32 0.0, %v1159
  %v1161 = vpop.f32.mrf.mxu0
  %v1162 = vadd.f32 0.0, %v1161
  %1163 = vmatmul.bf16.gmra.mxu0 %v106
  %v1164 = vpop.f32.mrf.mxu0
  %v1165 = vadd.f32 0.0, %v1164
  %v1166 = vpop.f32.mrf.mxu0
  %v1167 = vadd.f32 0.0, %v1166
  %1168 = vmatmul.bf16.gmra.mxu0 %v107
  %v1169 = vpop.f32.mrf.mxu0
  %v1170 = vadd.f32 0.0, %v1169
  %v1171 = vpop.f32.mrf.mxu0
  %v1172 = vadd.f32 0.0, %v1171
  %1173 = vdwg.mxu0
  %v1174 = vmul.f32 %v409, %v1135
  %v1175 = vmul.f32 %v414, %v1137
  %v1176 = vmul.f32 %v419, %v1140
  %v1177 = vmul.f32 %v424, %v1142
  %v1178 = vmul.f32 %v429, %v1145
  %v1179 = vmul.f32 %v434, %v1147
  %v1180 = vmul.f32 %v439, %v1150
  %v1181 = vmul.f32 %v444, %v1152
  %v1182 = vmul.f32 %v449, %v1155
  %v1183 = vmul.f32 %v454, %v1157
  %v1184 = vmul.f32 %v459, %v1160
  %v1185 = vmul.f32 %v464, %v1162
  %v1186 = vmul.f32 %v469, %v1165
  %v1187 = vmul.f32 %v474, %v1167
  %v1188 = vmul.f32 %v479, %v1170
  %v1189 = vmul.f32 %v484, %v1172
  %v1190 = vpack.c.bf16 %v915, %v914
  %v1191 = vpack.c.bf16 %v917, %v916
  %v1192 = vpack.c.bf16 %v919, %v918
  %v1193 = vpack.c.bf16 %v921, %v920
  %v1194 = vpack.c.bf16 %v923, %v922
  %v1195 = vpack.c.bf16 %v925, %v924
  %v1196 = vpack.c.bf16 %v927, %v926
  %v1197 = vpack.c.bf16 %v929, %v928
  %1198 = vmatpush.bf16.msra.mxu0 %v589
  %1199 = vmatpush.bf16.msra.mxu0 %v588
  %1200 = vmatpush.bf16.msra.mxu0 %v587
  %1201 = vmatpush.bf16.msra.mxu0 %v586
  %1202 = vmatpush.bf16.msra.mxu0 %v585
  %1203 = vmatpush.bf16.msra.mxu0 %v584
  %1204 = vmatpush.bf16.msra.mxu0 %v583
  %1205 = vmatpush.bf16.msra.mxu0 %v582
  %1206 = vmatmul.bf16.gmra.mxu0 %v1190
  %v1207 = vpop.f32.mrf.mxu0
  %v1208 = vadd.f32 0.0, %v1207
  %v1209 = vpop.f32.mrf.mxu0
  %v1210 = vadd.f32 0.0, %v1209
  %1211 = vmatmul.bf16.gmra.mxu0 %v1191
  %v1212 = vpop.f32.mrf.mxu0
  %v1213 = vadd.f32 0.0, %v1212
  %v1214 = vpop.f32.mrf.mxu0
  %v1215 = vadd.f32 0.0, %v1214
  %1216 = vmatmul.bf16.gmra.mxu0 %v1192
  %v1217 = vpop.f32.mrf.mxu0
  %v1218 = vadd.f32 0.0, %v1217
  %v1219 = vpop.f32.mrf.mxu0
  %v1220 = vadd.f32 0.0, %v1219
  %1221 = vmatmul.bf16.gmra.mxu0 %v1193
  %v1222 = vpop.f32.mrf.mxu0
  %v1223 = vadd.f32 0.0, %v1222
  %v1224 = vpop.f32.mrf.mxu0
  %v1225 = vadd.f32 0.0, %v1224
  %1226 = vmatmul.bf16.gmra.mxu0 %v1194
  %v1227 = vpop.f32.mrf.mxu0
  %v1228 = vadd.f32 0.0, %v1227
  %v1229 = vpop.f32.mrf.mxu0
  %v1230 = vadd.f32 0.0, %v1229
  %1231 = vmatmul.bf16.gmra.mxu0 %v1195
  %v1232 = vpop.f32.mrf.mxu0
  %v1233 = vadd.f32 0.0, %v1232
  %v1234 = vpop.f32.mrf.mxu0
  %v1235 = vadd.f32 0.0, %v1234
  %1236 = vmatmul.bf16.gmra.mxu0 %v1196
  %v1237 = vpop.f32.mrf.mxu0
  %v1238 = vadd.f32 0.0, %v1237
  %v1239 = vpop.f32.mrf.mxu0
  %v1240 = vadd.f32 0.0, %v1239
  %1241 = vmatmul.bf16.gmra.mxu0 %v1197
  %v1242 = vpop.f32.mrf.mxu0
  %v1243 = vadd.f32 0.0, %v1242
  %v1244 = vpop.f32.mrf.mxu0
  %v1245 = vadd.f32 0.0, %v1244
  %1246 = vdwg.mxu0
  %v1247 = vpack.c.bf16 %v1210, %v1208
  %v1248 = vpack.c.bf16 %v1215, %v1213
  %v1249 = vpack.c.bf16 %v1220, %v1218
  %v1250 = vpack.c.bf16 %v1225, %v1223
  %v1251 = vpack.c.bf16 %v1230, %v1228
  %v1252 = vpack.c.bf16 %v1235, %v1233
  %v1253 = vpack.c.bf16 %v1240, %v1238
  %v1254 = vpack.c.bf16 %v1245, %v1243
  %1255 = vmatpush.bf16.msra.mxu0 %v1254
  %1256 = vmatpush.bf16.msra.mxu0 %v1253
  %1257 = vmatpush.bf16.msra.mxu0 %v1252
  %1258 = vmatpush.bf16.msra.mxu0 %v1251
  %1259 = vmatpush.bf16.msra.mxu0 %v1250
  %1260 = vmatpush.bf16.msra.mxu0 %v1249
  %1261 = vmatpush.bf16.msra.mxu0 %v1248
  %1262 = vmatpush.bf16.msra.mxu0 %v1247
  %1263 = vmatmul.bf16.gmra.mxu0 %v76
  %v1264 = vpop.f32.mrf.mxu0
  %v1265 = vadd.f32 0.0, %v1264
  %v1266 = vpop.f32.mrf.mxu0
  %v1267 = vadd.f32 0.0, %v1266
  %1268 = vmatmul.bf16.gmra.mxu0 %v77
  %v1269 = vpop.f32.mrf.mxu0
  %v1270 = vadd.f32 0.0, %v1269
  %v1271 = vpop.f32.mrf.mxu0
  %v1272 = vadd.f32 0.0, %v1271
  %1273 = vmatmul.bf16.gmra.mxu0 %v78
  %v1274 = vpop.f32.mrf.mxu0
  %v1275 = vadd.f32 0.0, %v1274
  %v1276 = vpop.f32.mrf.mxu0
  %v1277 = vadd.f32 0.0, %v1276
  %1278 = vmatmul.bf16.gmra.mxu0 %v79
  %v1279 = vpop.f32.mrf.mxu0
  %v1280 = vadd.f32 0.0, %v1279
  %v1281 = vpop.f32.mrf.mxu0
  %v1282 = vadd.f32 0.0, %v1281
  %1283 = vmatmul.bf16.gmra.mxu0 %v80
  %v1284 = vpop.f32.mrf.mxu0
  %v1285 = vadd.f32 0.0, %v1284
  %v1286 = vpop.f32.mrf.mxu0
  %v1287 = vadd.f32 0.0, %v1286
  %1288 = vmatmul.bf16.gmra.mxu0 %v81
  %v1289 = vpop.f32.mrf.mxu0
  %v1290 = vadd.f32 0.0, %v1289
  %v1291 = vpop.f32.mrf.mxu0
  %v1292 = vadd.f32 0.0, %v1291
  %1293 = vmatmul.bf16.gmra.mxu0 %v82
  %v1294 = vpop.f32.mrf.mxu0
  %v1295 = vadd.f32 0.0, %v1294
  %v1296 = vpop.f32.mrf.mxu0
  %v1297 = vadd.f32 0.0, %v1296
  %1298 = vmatmul.bf16.gmra.mxu0 %v83
  %v1299 = vpop.f32.mrf.mxu0
  %v1300 = vadd.f32 0.0, %v1299
  %v1301 = vpop.f32.mrf.mxu0
  %v1302 = vadd.f32 0.0, %v1301
  %1303 = vdwg.mxu0
  %v1304 = vmul.f32 %v707, %v1265
  %v1305 = vmul.f32 %v712, %v1267
  %v1306 = vmul.f32 %v717, %v1270
  %v1307 = vmul.f32 %v722, %v1272
  %v1308 = vmul.f32 %v727, %v1275
  %v1309 = vmul.f32 %v732, %v1277
  %v1310 = vmul.f32 %v737, %v1280
  %v1311 = vmul.f32 %v742, %v1282
  %v1312 = vmul.f32 %v747, %v1285
  %v1313 = vmul.f32 %v752, %v1287
  %v1314 = vmul.f32 %v757, %v1290
  %v1315 = vmul.f32 %v762, %v1292
  %v1316 = vmul.f32 %v767, %v1295
  %v1317 = vmul.f32 %v772, %v1297
  %v1318 = vmul.f32 %v777, %v1300
  %v1319 = vmul.f32 %v782, %v1302
  %1320 = vst [vmem:[%s7] sm:$0xff] %v1174
  %1321 = vst [vmem:[%s7 + $0x8] sm:$0xff] %v1175
  %1322 = vst [vmem:[%s7 + $0x10] sm:$0xff] %v1176
  %1323 = vst [vmem:[%s7 + $0x18] sm:$0xff] %v1177
  %1324 = vst [vmem:[%s7 + $0x20] sm:$0xff] %v1178
  %1325 = vst [vmem:[%s7 + $0x28] sm:$0xff] %v1179
  %1326 = vst [vmem:[%s7 + $0x30] sm:$0xff] %v1180
  %1327 = vst [vmem:[%s7 + $0x38] sm:$0xff] %v1181
  %1328 = vst [vmem:[%s7 + $0x40] sm:$0xff] %v1182
  %1329 = vst [vmem:[%s7 + $0x48] sm:$0xff] %v1183
  %1330 = vst [vmem:[%s7 + $0x50] sm:$0xff] %v1184
  %1331 = vst [vmem:[%s7 + $0x58] sm:$0xff] %v1185
  %1332 = vst [vmem:[%s7 + $0x60] sm:$0xff] %v1186
  %1333 = vst [vmem:[%s7 + $0x68] sm:$0xff] %v1187
  %1334 = vst [vmem:[%s7 + $0x70] sm:$0xff] %v1188
  %1335 = vst [vmem:[%s7 + $0x78] sm:$0xff] %v1189
  %1336 = vst [vmem:[%s8] sm:$0xff] %v1304
  %1337 = vst [vmem:[%s8 + $0x8] sm:$0xff] %v1305
  %1338 = vst [vmem:[%s8 + $0x10] sm:$0xff] %v1306
  %1339 = vst [vmem:[%s8 + $0x18] sm:$0xff] %v1307
  %1340 = vst [vmem:[%s8 + $0x20] sm:$0xff] %v1308
  %1341 = vst [vmem:[%s8 + $0x28] sm:$0xff] %v1309
  %1342 = vst [vmem:[%s8 + $0x30] sm:$0xff] %v1310
  %1343 = vst [vmem:[%s8 + $0x38] sm:$0xff] %v1311
  %1344 = vst [vmem:[%s8 + $0x40] sm:$0xff] %v1312
  %1345 = vst [vmem:[%s8 + $0x48] sm:$0xff] %v1313
  %1346 = vst [vmem:[%s8 + $0x50] sm:$0xff] %v1314
  %1347 = vst [vmem:[%s8 + $0x58] sm:$0xff] %v1315
  %1348 = vst [vmem:[%s8 + $0x60] sm:$0xff] %v1316
  %1349 = vst [vmem:[%s8 + $0x68] sm:$0xff] %v1317
  %1350 = vst [vmem:[%s8 + $0x70] sm:$0xff] %v1318
  %1351 = vst [vmem:[%s8 + $0x78] sm:$0xff] %v1319
  // Predicated region
  $region30: #{bipartite_gcn_forward.1} parent=0 // pred_check
    _
  $region31: #{bipartite_gcn_forward.1} parent=0 // pred_check_branch
    %1353 = sbr.rel (0) target = $region33
  $region32: #{bipartite_gcn_forward.1} parent=0 // pred_region
    _
  $region33: #{bipartite_gcn_forward.1} parent=0 // pred_fallthru
    _
  // Predicated region
  $region34: #{bipartite_gcn_forward.1} parent=0 // pred_check
    _
  $region35: #{bipartite_gcn_forward.1} parent=0 // pred_check_branch
    %1355 = sbr.rel (0) target = $region37
  $region36: #{bipartite_gcn_forward.1} parent=0 // pred_region
    _
  $region37: #{bipartite_gcn_forward.1} parent=0 // pred_fallthru
    _
  // Predicated region
  $region38: #{bipartite_gcn_forward.1} parent=0 // pred_check
    _
  $region39: #{bipartite_gcn_forward.1} parent=0 // pred_check_branch
    %1357 = sbr.rel (0) target = $region41
  $region40: #{bipartite_gcn_forward.1} parent=0 // pred_region
    _
  $region41: #{bipartite_gcn_forward.1} parent=0 // pred_fallthru
    _
  // Predicated region
  $region42: #{bipartite_gcn_forward.1} parent=0 // pred_check
    _
  $region43: #{bipartite_gcn_forward.1} parent=0 // pred_check_branch
    %1359 = sbr.rel (0) target = $region45
  $region44: #{bipartite_gcn_forward.1} parent=0 // pred_region
    _
  $region45: #{bipartite_gcn_forward.1} parent=0 // pred_fallthru
    _

</llo_original>
